<compile_context>
chip_gen: v7x
topology: tpu7x:2x2x1
jax: 0.10.0
libtpu: 0.0.40
codegen_flags: <defaults>
</compile_context>

<pallas_src>
import functools

import jax
import jax.numpy as jnp
from jax.experimental import pallas as pl
from jax.experimental.pallas import tpu as pltpu


def _chain_kernel(x_ref, o_ref):
    v = x_ref[...]
    v = v + 2.0
    v = v - 3.0
    v = v * 4.0
    v = v / 5.0
    o_ref[...] = v


@functools.partial(jax.jit, static_argnames=("max_lane_width", "target_block_bytes"))
def pt_module_forward(x, *, max_lane_width=1024, target_block_bytes=8 * 1024 * 1024):
    """Applies ((x + 2) - 3) * 4 / 5 elementwise via a Pallas TPU kernel."""
    orig_shape = x.shape

    # PyTorch's `/ 5` is true division: integer/bool inputs promote to float.
    if not jnp.issubdtype(x.dtype, jnp.floating):
        x = x.astype(jnp.float32)
    dtype = x.dtype
    itemsize = jnp.dtype(dtype).itemsize
    # Packed sublane tile: 8 rows for 4-byte, 16 for 2-byte, 32 for 1-byte dtypes.
    sublane = max(8, 32 // itemsize)

    flat = x.reshape(-1)
    n = flat.shape[0]

    # --- Pick a lane-dense column width (multiple of 128). Prefer an exact
    # divisor of n so we avoid pad/slice HBM passes entirely. ---
    cols = 0
    c = min(max_lane_width, (n // 128) * 128)
    while c >= 128:
        if n % c == 0:
            cols = c
            break
        c -= 128
    if cols == 0:
        # Odd / tiny size: minimal pad up to a multiple of 128 lanes.
        cols = 128
        n_pad = (-n) % cols
        flat = jnp.pad(flat, (0, n_pad))
    else:
        n_pad = 0

    rows = flat.shape[0] // cols
    x2d = flat.reshape(rows, cols)

    # --- Row tile: ~target_block_bytes per block, rounded to the packed sublane
    # tile. For large inputs, cap so the grid has >= 2 steps (both v7x cores). ---
    budget_rows = max(sublane, (target_block_bytes // (cols * itemsize)) // sublane * sublane)
    tile_r = budget_rows
    total_bytes = rows * cols * itemsize
    if total_bytes > (1 << 20) and rows >= 2 * sublane:
        half_rows = max(sublane, (rows // 2) // sublane * sublane)
        tile_r = min(tile_r, half_rows)
    if tile_r >= rows:
        tile_r = rows  # single full-extent block; no divisibility requirement
    tile_r = int(tile_r)

    grid = (pl.cdiv(rows, tile_r),)
    out2d = pl.pallas_call(
        _chain_kernel,
        out_shape=jax.ShapeDtypeStruct((rows, cols), dtype),
        grid=grid,
        in_specs=[pl.BlockSpec((tile_r, cols), lambda i: (i, 0))],
        out_specs=pl.BlockSpec((tile_r, cols), lambda i: (i, 0)),
        compiler_params=pltpu.CompilerParams(
            dimension_semantics=("parallel",),
            vmem_limit_bytes=48 * 1024 * 1024,
        ),
    )(x2d)

    out_flat = out2d.reshape(-1)
    if n_pad:
        out_flat = out_flat[:n]
    return out_flat.reshape(orig_shape)


if __name__ == "__main__":
    key = jax.random.PRNGKey(0)
    x = jax.random.normal(key, (2, 4, 16, 16), dtype=jnp.float32)

    y = pt_module_forward(x)
    jax.block_until_ready(y)

    # Reference follows the original op-by-op chain.
    ref = (((x + 2.0) - 3.0) * 4.0) / 5.0
    assert y.shape == x.shape, "shape mismatch vs reference"
    assert y.dtype == ref.dtype, "dtype mismatch vs reference"
    assert jnp.allclose(y, ref, atol=1e-6, rtol=1e-6), "mismatch vs reference"

    print("KERNEL_OK")
</pallas_src>

<mosaic_0001>
module attributes {stable_mosaic.version = 11 : i64} {
  func.func @_chain_kernel(%arg0: i32, %arg1: memref<2x1024xf32, #tpu.memory_space<vmem>>, %arg2: memref<2x1024xf32, #tpu.memory_space<vmem>>) attributes {dimension_semantics = [#tpu.dimension_semantics<parallel>], iteration_bounds = array<i64: 1>, scalar_prefetch = 0 : i64, scratch_operands = 0 : i64, tpu.core_type = #tpu.core_type<tc>, window_params = [{transform_indices = @transform_0, window_bounds = array<i64: 2, 1024>}, {transform_indices = @transform_1, window_bounds = array<i64: 2, 1024>}]} {
    %c0 = arith.constant 0 : index
    %c0_0 = arith.constant 0 : index
    %0 = vector.load %arg1[%c0, %c0_0] : memref<2x1024xf32, #tpu.memory_space<vmem>>, vector<2x1024xf32>
    %cst = arith.constant 2.000000e+00 : f32
    %1 = vector.broadcast %cst : f32 to vector<2x1024xf32>
    %2 = arith.addf %0, %1 : vector<2x1024xf32>
    %cst_1 = arith.constant 3.000000e+00 : f32
    %3 = vector.broadcast %cst_1 : f32 to vector<2x1024xf32>
    %4 = arith.subf %2, %3 : vector<2x1024xf32>
    %cst_2 = arith.constant 4.000000e+00 : f32
    %5 = vector.broadcast %cst_2 : f32 to vector<2x1024xf32>
    %6 = arith.mulf %4, %5 : vector<2x1024xf32>
    %cst_3 = arith.constant 5.000000e+00 : f32
    %7 = vector.broadcast %cst_3 : f32 to vector<2x1024xf32>
    %8 = arith.divf %6, %7 : vector<2x1024xf32>
    %c0_4 = arith.constant 0 : index
    %c0_5 = arith.constant 0 : index
    %9 = vector.load %arg2[%c0_4, %c0_5] : memref<2x1024xf32, #tpu.memory_space<vmem>>, vector<2x1024xf32>
    tpu.vector_store %arg2[%c0_4, %c0_5], %8 {strides = array<i32>} : memref<2x1024xf32, #tpu.memory_space<vmem>>, vector<2x1024xf32>,
    return
  }
  func.func @transform_0(%arg0: i32) -> (i32, i32) {
    %c0_i32 = arith.constant 0 : i32
    %c0_i32_0 = arith.constant 0 : i32
    return %arg0, %c0_i32 : i32, i32
  }
  func.func @transform_1(%arg0: i32) -> (i32, i32) {
    %c0_i32 = arith.constant 0 : i32
    %c0_i32_0 = arith.constant 0 : i32
    return %arg0, %c0_i32 : i32, i32
  }
}

</mosaic_0001>

<llo_original>
// kernel: pt_module_forward.1
$region0: #{pt_module_forward.1}
  #allocation0 [shape = 'u32[]', space=smem, size = 0x4, offset = 0x4, fixed_abs, tag = 'smem constant byte address 0x4 - core index']
  #allocation1 [shape = 'u32[144,128]{1,0:T(1,128)}', space=vmem, size = 0x12000, scoped, tag = 'internal scratch']
  %s0 = inlined_call_operand.vmem [shape: f32[2,1024], index: 0, kind: input, shape index: {}]
  %s1 = inlined_call_operand.vmem [shape: f32[2,1024], index: 1, kind: output, shape index: {}]
  %s2 = sld [smem:[#allocation0]]
  $region14: #{pt_module_forward.1} parent=0
    _
  %s4 = ssub.s32 1, %s2
  %s5 = scalar_select 0, %s4, %s2
  // Predicated region
  $region2: #{pt_module_forward.1} parent=0 // pred_check
    _
  $region3: #{pt_module_forward.1} parent=0 // pred_check_branch
    %7 = sbr.rel (0) target = $region5
  $region4: #{pt_module_forward.1} parent=0 // pred_region
    _
  $region5: #{pt_module_forward.1} parent=0 // pred_fallthru
    _
  %v8 = vld [vmem:[%s0] sm:$0xff]
  %v9 = vld [vmem:[%s0 + $0x8] sm:$0xff]
  %v10 = vadd.f32 %v8, 2.0
  %v11 = vadd.f32 %v9, 2.0
  %v12 = vsub.f32 %v10, 3.0
  %v13 = vsub.f32 %v11, 3.0
  %v14 = vmul.f32 %v12, 4.0
  %v15 = vmul.f32 %v13, 4.0
  %v16 = vrcp.pop 5.0
  %v17 = vmul.f32 %v14, %v16
  %v18 = vmul.f32 %v15, %v16
  %19 = vst [vmem:[%s1] sm:$0xff] %v17
  %20 = vst [vmem:[%s1 + $0x8] sm:$0xff] %v18
  // Predicated region
  $region6: #{pt_module_forward.1} parent=0 // pred_check
    _
  $region7: #{pt_module_forward.1} parent=0 // pred_check_branch
    %22 = sbr.rel (0) target = $region9
  $region8: #{pt_module_forward.1} parent=0 // pred_region
    _
  $region9: #{pt_module_forward.1} parent=0 // pred_fallthru
    _
  // Predicated region
  $region10: #{pt_module_forward.1} parent=0 // pred_check
    _
  $region11: #{pt_module_forward.1} parent=0 // pred_check_branch
    %24 = sbr.rel (0) target = $region13
  $region12: #{pt_module_forward.1} parent=0 // pred_region
    _
  $region13: #{pt_module_forward.1} parent=0 // pred_fallthru
    _

</llo_original>
